<compile_context>
chip_gen: v7x
topology: tpu7x:2x2x1
jax: 0.10.0
libtpu: 0.0.40
codegen_flags: <defaults>
</compile_context>

<pallas_src>
import functools

import jax
import jax.numpy as jnp
from jax.experimental import pallas as pl
from jax.experimental.pallas import tpu as pltpu


def _st_linear_attn_kernel(q_ref, k_ref, v_ref, mask_ref, bd_ref, o_ref, *, eps):
    """G (b, n) slabs per grid step; all heads handled by block-diagonal wide matmuls.

    Ref shapes (HD = H*D, HM = H*M):
      q_ref   : (G, L, HD)   queries, heads collapsed into lanes
      k_ref   : (G, S, HD)   keys
      v_ref   : (G, S, HM)   values
      mask_ref: (G, S, 1)    key-length validity mask per slab
      bd_ref  : (HD, HM)     resident 0/1 block-diagonal head mask
      o_ref   : (G, L, HM)   lane-dense output slab
    """
    f32 = jnp.float32
    q = q_ref[...].astype(f32)
    k = k_ref[...].astype(f32)
    v = v_ref[...].astype(f32)
    m = mask_ref[...].astype(f32)          # (G, S, 1)
    bd = bd_ref[...].astype(f32)           # (HD, HM)

    # Fused elu(x)+1 feature map (negative branch = exp -> EUP slot).
    q = jnp.where(q > 0, q + 1.0, jnp.exp(q))
    k = jnp.where(k > 0, k + 1.0, jnp.exp(k)) * m      # mask broadcasts over H*D lanes

    # One wide batched MXU pass: kv[g] = k[g]^T @ v[g] -> (G, HD, HM);
    # keep only the per-head diagonal blocks (cross-head entries zeroed exactly).
    kv = jnp.einsum('gsd,gsc->gdc', k, v, preferred_element_type=f32)
    kv = kv * bd[None, :, :]

    # Denominator reuses the identical wide matmul shape:
    #   den[g, l, h*M + m] = sum_{d in head h} q[g,l,d] * ksum[g,d]
    # i.e. the per-head normalizer already broadcast over that head's M lanes.
    ksum = jnp.sum(k, axis=1)                           # (G, HD)
    dw = ksum[:, :, None] * bd[None, :, :]              # (G, HD, HM)

    num = jnp.einsum('gld,gdc->glc', q, kv, preferred_element_type=f32)   # (G, L, HM)
    den = jnp.einsum('gld,gdc->glc', q, dw, preferred_element_type=f32)   # (G, L, HM)

    z = 1.0 / (den + eps)                               # exact divide, matches reference
    o_ref[...] = (num * z).astype(o_ref.dtype)


def _vmem_capacity_bytes(default=64 * 1024 * 1024):
    """Best-effort query of the chip's physical VMEM; safe fallback if unavailable."""
    try:
        info = pltpu.get_tpu_info()
        return int(getattr(info, "vmem_capacity_bytes", default))
    except Exception:
        return default


def _pick_slabs_per_step(BN, per_slab_bytes, budget_bytes):
    """Largest divisor of BN fitting the VMEM budget, keeping >=2 grid steps when possible
    so the 'parallel' grid axis can still be sharded across v7x's two TensorCores."""
    if BN <= 1:
        return 1
    cap = max(1, BN // 2)
    best = 1
    for g in range(1, cap + 1):
        if BN % g == 0 and g * per_slab_bytes <= budget_bytes:
            best = g
    return best


def st_linear_attention(queries, keys, values, key_lengths_float,
                        attn_mask_all_ones=True, eps=1e-6):
    """queries: (B,N,L,H,D)  keys: (B,N,S,H,D)  values: (B,N,S,H,M)
    key_lengths_float: (B,S) float validity mask.  Returns (B,N,L,H,M)."""
    if not attn_mask_all_ones:
        raise RuntimeError("LinearAttention does not support arbitrary attention masks")

    B, N, L, H, D = queries.shape
    S = keys.shape[2]
    M = values.shape[4]
    BN, HD, HM = B * N, H * D, H * M

    # Free row-major collapses: heads fold into the lane axis, no HBM transposes.
    q = queries.reshape(BN, L, HD)
    k = keys.reshape(BN, S, HD)
    v = values.reshape(BN, S, HM)
    # Tiny broadcast of the (B,S) mask to one row per slab -> simple index_map for any G.
    mask = jnp.broadcast_to(key_lengths_float[:, None, :], (B, N, S)).reshape(BN, S, 1)
    mask = mask.astype(jnp.float32)

    # Resident 0/1 block-diagonal head mask: bd[h*D+d, h'*M+m] = (h == h').
    row_h = jnp.repeat(jnp.arange(H, dtype=jnp.int32), D)        # (HD,)
    col_h = jnp.repeat(jnp.arange(H, dtype=jnp.int32), M)        # (HM,)
    bd = (row_h[:, None] == col_h[None, :]).astype(jnp.float32)  # (HD, HM)

    # Per-slab VMEM working set (double-buffered blocks + f32 intermediates headroom).
    itm = jnp.dtype(queries.dtype).itemsize
    per_slab_bytes = 2 * itm * (L * HD + S * HD + S * HM + S + L * HM) \
                     + 4 * (2 * HD * HM + 2 * L * HM)
    vmem_cap = _vmem_capacity_bytes()
    budget = min(vmem_cap // 4, 16 * 1024 * 1024)
    G = _pick_slabs_per_step(BN, per_slab_bytes, budget)
    vmem_limit = int(min(vmem_cap * 3 // 4, 100 * 1024 * 1024))

    grid = (BN // G,)
    out = pl.pallas_call(
        functools.partial(_st_linear_attn_kernel, eps=eps),
        out_shape=jax.ShapeDtypeStruct((BN, L, HM), queries.dtype),
        grid_spec=pltpu.PrefetchScalarGridSpec(
            num_scalar_prefetch=0,
            grid=grid,
            in_specs=[
                pl.BlockSpec((G, L, HD), lambda g: (g, 0, 0)),
                pl.BlockSpec((G, S, HD), lambda g: (g, 0, 0)),
                pl.BlockSpec((G, S, HM), lambda g: (g, 0, 0)),
                pl.BlockSpec((G, S, 1),  lambda g: (g, 0, 0)),
                pl.BlockSpec((HD, HM),   lambda g: (0, 0)),      # resident, never re-fetched
            ],
            out_specs=pl.BlockSpec((G, L, HM), lambda g: (g, 0, 0)),
        ),
        compiler_params=pltpu.CompilerParams(
            dimension_semantics=("parallel",),
            vmem_limit_bytes=vmem_limit,
        ),
    )(q, k, v, mask, bd)

    # (BN, L, H*M) is exactly the row-major layout of (B, N, L, H, M): free reshape.
    return out.reshape(B, N, L, H, M)


def st_linear_attention_reference(queries, keys, values, key_lengths_float, eps=1e-6):
    Q = jax.nn.elu(queries) + 1.0
    K = jax.nn.elu(keys) + 1.0
    K = K * key_lengths_float[:, None, :, None, None]
    KV = jnp.einsum('bnshd,bnshm->bnhmd', K, values)
    Z = 1.0 / (jnp.einsum('bnlhd,bnhd->bnlh', Q, K.sum(axis=2)) + eps)
    return jnp.einsum('bnlhd,bnhmd,bnlh->bnlhm', Q, KV, Z)


if __name__ == "__main__":
    # Small shapes consistent with the module's (B, N, L/S, H, D/M) convention.
    B, N, L, S, H, D, M = 2, 2, 8, 8, 4, 16, 16

    key = jax.random.PRNGKey(0)
    kq, kk, kv = jax.random.split(key, 3)
    queries = jax.random.normal(kq, (B, N, L, H, D), dtype=jnp.float32)
    keys    = jax.random.normal(kk, (B, N, S, H, D), dtype=jnp.float32)
    values  = jax.random.normal(kv, (B, N, S, H, M), dtype=jnp.float32)

    # key_lengths.float_matrix: (B, S) validity mask; deterministic & non-trivial.
    key_lengths_float = jnp.ones((B, S), dtype=jnp.float32)
    key_lengths_float = key_lengths_float.at[1, S - 2:].set(0.0)

    out = st_linear_attention(queries, keys, values, key_lengths_float,
                              attn_mask_all_ones=True, eps=1e-6)
    out = jax.block_until_ready(out)

    ref = st_linear_attention_reference(queries, keys, values, key_lengths_float, eps=1e-6)
    assert out.shape == (B, N, L, H, M)
    assert jnp.allclose(out, ref, rtol=1e-5, atol=1e-5), "mismatch vs pure-JAX reference"

    print("KERNEL_OK")
</pallas_src>

<mosaic_0001>
module attributes {stable_mosaic.version = 11 : i64} {
  func.func @_st_linear_attn_kernel(%arg0: i32, %arg1: memref<2x8x64xf32, #tpu.memory_space<vmem>>, %arg2: memref<2x8x64xf32, #tpu.memory_space<vmem>>, %arg3: memref<2x8x64xf32, #tpu.memory_space<vmem>>, %arg4: memref<2x8x1xf32, #tpu.memory_space<vmem>>, %arg5: memref<64x64xf32, #tpu.memory_space<vmem>>, %arg6: memref<2x8x64xf32, #tpu.memory_space<vmem>>) attributes {dimension_semantics = [#tpu.dimension_semantics<parallel>], iteration_bounds = array<i64: 2>, scalar_prefetch = 0 : i64, scratch_operands = 0 : i64, tpu.core_type = #tpu.core_type<tc>, window_params = [{transform_indices = @transform_0, window_bounds = array<i64: 2, 8, 64>}, {transform_indices = @transform_1, window_bounds = array<i64: 2, 8, 64>}, {transform_indices = @transform_2, window_bounds = array<i64: 2, 8, 64>}, {transform_indices = @transform_3, window_bounds = array<i64: 2, 8, 1>}, {pipeline_mode = #tpu.pipeline_mode<synchronous>, transform_indices = @transform_4, window_bounds = array<i64: 64, 64>}, {transform_indices = @transform_5, window_bounds = array<i64: 2, 8, 64>}]} {
    %c0 = arith.constant 0 : index
    %c0_0 = arith.constant 0 : index
    %c0_1 = arith.constant 0 : index
    %0 = vector.load %arg1[%c0, %c0_0, %c0_1] : memref<2x8x64xf32, #tpu.memory_space<vmem>>, vector<2x8x64xf32>
    %c0_2 = arith.constant 0 : index
    %c0_3 = arith.constant 0 : index
    %c0_4 = arith.constant 0 : index
    %1 = vector.load %arg2[%c0_2, %c0_3, %c0_4] : memref<2x8x64xf32, #tpu.memory_space<vmem>>, vector<2x8x64xf32>
    %c0_5 = arith.constant 0 : index
    %c0_6 = arith.constant 0 : index
    %c0_7 = arith.constant 0 : index
    %2 = vector.load %arg3[%c0_5, %c0_6, %c0_7] : memref<2x8x64xf32, #tpu.memory_space<vmem>>, vector<2x8x64xf32>
    %c0_8 = arith.constant 0 : index
    %c0_9 = arith.constant 0 : index
    %c0_10 = arith.constant 0 : index
    %3 = vector.load %arg4[%c0_8, %c0_9, %c0_10] : memref<2x8x1xf32, #tpu.memory_space<vmem>>, vector<2x8x1xf32>
    %c0_11 = arith.constant 0 : index
    %c0_12 = arith.constant 0 : index
    %4 = vector.load %arg5[%c0_11, %c0_12] : memref<64x64xf32, #tpu.memory_space<vmem>>, vector<64x64xf32>
    %cst = arith.constant 0.000000e+00 : f32
    %5 = vector.broadcast %cst : f32 to vector<2x8x64xf32>
    %6 = arith.cmpf ogt, %0, %5 : vector<2x8x64xf32>
    %cst_13 = arith.constant 1.000000e+00 : f32
    %7 = vector.broadcast %cst_13 : f32 to vector<2x8x64xf32>
    %8 = arith.addf %0, %7 : vector<2x8x64xf32>
    %9 = math.exp %0 : vector<2x8x64xf32>
    %10 = arith.select %6, %8, %9 : vector<2x8x64xi1>, vector<2x8x64xf32>
    %cst_14 = arith.constant 0.000000e+00 : f32
    %11 = vector.broadcast %cst_14 : f32 to vector<2x8x64xf32>
    %12 = arith.cmpf ogt, %1, %11 : vector<2x8x64xf32>
    %cst_15 = arith.constant 1.000000e+00 : f32
    %13 = vector.broadcast %cst_15 : f32 to vector<2x8x64xf32>
    %14 = arith.addf %1, %13 : vector<2x8x64xf32>
    %15 = math.exp %1 : vector<2x8x64xf32>
    %16 = arith.select %12, %14, %15 : vector<2x8x64xi1>, vector<2x8x64xf32>
    %17 = vector.broadcast %3 : vector<2x8x1xf32> to vector<2x8x64xf32>
    %18 = arith.mulf %16, %17 : vector<2x8x64xf32>
    "tpu.trace_start"() <{level = 10 : i32, message = "gsd,gsc->gdc"}> : () -> ()
    %cst_16 = arith.constant dense<0.000000e+00> : vector<2x64x64xf32>
    %19 = tpu.matmul %18, %2, %cst_16 {dimension_numbers = #tpu.dot_dimension_numbers<[1], [1], [2], [2], [0, 0, 0, 2, 1, 2], [0], [0]>} : vector<2x8x64xf32>, vector<2x8x64xf32>, vector<2x64x64xf32> -> vector<2x64x64xf32>
    "tpu.trace_stop"() : () -> ()
    %20 = vector.shape_cast %4 : vector<64x64xf32> to vector<1x64x64xf32>
    %21 = vector.broadcast %20 : vector<1x64x64xf32> to vector<2x64x64xf32>
    %22 = arith.mulf %19, %21 : vector<2x64x64xf32>
    %cst_17 = arith.constant dense<0.000000e+00> : vector<2x64xf32>
    %23 = vector.multi_reduction <add>, %18, %cst_17 [1] : vector<2x8x64xf32> to vector<2x64xf32>
    %24 = vector.shape_cast %23 : vector<2x64xf32> to vector<2x64x1xf32>
    %25 = vector.shape_cast %4 : vector<64x64xf32> to vector<1x64x64xf32>
    %26 = vector.broadcast %24 : vector<2x64x1xf32> to vector<2x64x64xf32>
    %27 = vector.broadcast %25 : vector<1x64x64xf32> to vector<2x64x64xf32>
    %28 = arith.mulf %26, %27 : vector<2x64x64xf32>
    "tpu.trace_start"() <{level = 10 : i32, message = "gld,gdc->glc"}> : () -> ()
    %cst_18 = arith.constant dense<0.000000e+00> : vector<2x8x64xf32>
    %29 = tpu.matmul %10, %22, %cst_18 {dimension_numbers = #tpu.dot_dimension_numbers<[2], [1], [1], [2], [0, 0, 0, 1, 1, 2], [0], [0]>} : vector<2x8x64xf32>, vector<2x64x64xf32>, vector<2x8x64xf32> -> vector<2x8x64xf32>
    %cst_19 = arith.constant dense<0.000000e+00> : vector<2x8x64xf32>
    %30 = tpu.matmul %10, %28, %cst_19 {dimension_numbers = #tpu.dot_dimension_numbers<[2], [1], [1], [2], [0, 0, 0, 1, 1, 2], [0], [0]>} : vector<2x8x64xf32>, vector<2x64x64xf32>, vector<2x8x64xf32> -> vector<2x8x64xf32>
    "tpu.trace_stop"() : () -> ()
    %cst_20 = arith.constant 9.99999997E-7 : f32
    %31 = vector.broadcast %cst_20 : f32 to vector<2x8x64xf32>
    %32 = arith.addf %30, %31 : vector<2x8x64xf32>
    %cst_21 = arith.constant 1.000000e+00 : f32
    %33 = vector.broadcast %cst_21 : f32 to vector<2x8x64xf32>
    %34 = arith.divf %33, %32 : vector<2x8x64xf32>
    %35 = arith.mulf %29, %34 : vector<2x8x64xf32>
    %c0_22 = arith.constant 0 : index
    %c0_23 = arith.constant 0 : index
    %c0_24 = arith.constant 0 : index
    %36 = vector.load %arg6[%c0_22, %c0_23, %c0_24] : memref<2x8x64xf32, #tpu.memory_space<vmem>>, vector<2x8x64xf32>
    tpu.vector_store %arg6[%c0_22, %c0_23, %c0_24], %35 {strides = array<i32>} : memref<2x8x64xf32, #tpu.memory_space<vmem>>, vector<2x8x64xf32>,
    return
  }
  func.func @transform_0(%arg0: i32) -> (i32, i32, i32) {
    %c0_i32 = arith.constant 0 : i32
    %c0_i32_0 = arith.constant 0 : i32
    %c0_i32_1 = arith.constant 0 : i32
    return %arg0, %c0_i32, %c0_i32_0 : i32, i32, i32
  }
  func.func @transform_1(%arg0: i32) -> (i32, i32, i32) {
    %c0_i32 = arith.constant 0 : i32
    %c0_i32_0 = arith.constant 0 : i32
    %c0_i32_1 = arith.constant 0 : i32
    return %arg0, %c0_i32, %c0_i32_0 : i32, i32, i32
  }
  func.func @transform_2(%arg0: i32) -> (i32, i32, i32) {
    %c0_i32 = arith.constant 0 : i32
    %c0_i32_0 = arith.constant 0 : i32
    %c0_i32_1 = arith.constant 0 : i32
    return %arg0, %c0_i32, %c0_i32_0 : i32, i32, i32
  }
  func.func @transform_3(%arg0: i32) -> (i32, i32, i32) {
    %c0_i32 = arith.constant 0 : i32
    %c0_i32_0 = arith.constant 0 : i32
    %c0_i32_1 = arith.constant 0 : i32
    return %arg0, %c0_i32, %c0_i32_0 : i32, i32, i32
  }
  func.func @transform_4(%arg0: i32) -> (i32, i32) {
    %c0_i32 = arith.constant 0 : i32
    %c0_i32_0 = arith.constant 0 : i32
    %c0_i32_1 = arith.constant 0 : i32
    return %c0_i32, %c0_i32_0 : i32, i32
  }
  func.func @transform_5(%arg0: i32) -> (i32, i32, i32) {
    %c0_i32 = arith.constant 0 : i32
    %c0_i32_0 = arith.constant 0 : i32
    %c0_i32_1 = arith.constant 0 : i32
    return %arg0, %c0_i32, %c0_i32_0 : i32, i32, i32
  }
}

</mosaic_0001>

<llo_original>
// kernel: tpu_custom_call.1
$region0: #{tpu_custom_call.1}
  #allocation0 [shape = 'u32[]', space=smem, size = 0x4, offset = 0x4, fixed_abs, tag = 'smem constant byte address 0x4 - core index']
  #allocation1 [shape = 'u32[144,128]{1,0:T(1,128)}', space=vmem, size = 0x12000, scoped, tag = 'internal scratch']
  %s0 = inlined_call_operand.vmem [shape: f32[4,8,64], index: 0, kind: input, shape index: {}]
  %s1 = inlined_call_operand.hbm [shape: f32[4,8,64], index: 1, kind: input, shape index: {}]
  %s2 = inlined_call_operand.hbm [shape: f32[4,8,64], index: 2, kind: input, shape index: {}]
  %s3 = inlined_call_operand.vmem [shape: f32[4,8,1], index: 3, kind: input, shape index: {}]
  %s4 = inlined_call_operand.hbm [shape: f32[64,64], index: 4, kind: input, shape index: {}]
  %s5 = inlined_call_operand.hbm [shape: f32[4,8,64], index: 5, kind: output, shape index: {}]
  %s6 = sld [smem:[#allocation0]]
  $region65: #{tpu_custom_call.1} parent=0
    _
  %s8 = ssub.s32 1, %s6
  %s9 = scalar_select 0, %s8, %s6
  $region1: #{tpu_custom_call.1} parent=0
    #allocation2 [shape = 'u8[16384]{0}', space=vmem, size = 0x4000, scoped, tag = 'input window, operand 1']
    #allocation3 [shape = 's32[2]{0}', space=sflag, size = 0x8, scoped, tag = 'scoped memory for tpu_custom_call.1']
    #allocation4 [shape = 's32[2]{0}', space=sflag, size = 0x8, scoped, tag = 'scoped memory for tpu_custom_call.1']
    #allocation5 [shape = 'u8[16384]{0}', space=vmem, size = 0x4000, scoped, tag = 'input window, operand 2']
    #allocation6 [shape = 's32[2]{0}', space=sflag, size = 0x8, scoped, tag = 'scoped memory for tpu_custom_call.1']
    #allocation7 [shape = 'u8[32768]{0}', space=vmem, size = 0x8000, scoped, tag = 'input window, operand 4, single buffered']
    #allocation8 [shape = 'u8[16384]{0}', space=vmem, size = 0x4000, scoped, tag = 'output window, operand 0']
    %10 = vsyncpa [#allocation3], 0
    %s11 = scalar_lea.sflag [#allocation3], 1
    %12 = vsyncpa %s11, 0
    %13 = vsyncpa [#allocation6], 0
    %s14 = scalar_lea.sflag [#allocation6], 1
    %15 = vsyncpa %s14, 0
    %16 = vsyncpa [#allocation4], 0
    %s17 = scalar_lea.sflag [#allocation4], 1
    %18 = vsyncpa %s17, 0
    loop: start=0, step=1, limit=4
    $region2: #{tpu_custom_call.1} parent=1 // loop_pre_header
      _
    $region3: #{tpu_custom_call.1} parent=1 // loop_header
      %s20 = sphi 0, %s24
      %p21 = scmp.ge.s32.totalorder %s20, 4
      %s30 = sphi 0, %s32
      %s33 = sphi 0, %s30
      %s34 = sphi 0, %s33
      %s50 = sphi 0, %s34
      %s56 = sphi 0, %s58
      %s59 = sphi 0, %s56
      %s60 = sphi 0, %s59
      %s76 = sphi 0, %s60
      %s82 = sphi 0, %s84
      %s85 = sphi 0, %s82
      %s86 = sphi 0, %s85
      %s102 = sphi 0, %s86
      %s108 = sphi 0, %s110
      %s111 = sphi 0, %s108
      %s112 = sphi 0, %s111
      %s128 = sphi 0, %s112
      %s132 = sphi 0, %s132
      %s134 = sphi 0, %s132
      %s135 = sphi 0, %s134
      %s149 = sphi 0, %s135
      %s155 = sphi 0, %s157
      %s158 = sphi 0, %s155
      %s159 = sphi 0, %s158
      %s175 = sphi 0, %s159
    $region4: #{tpu_custom_call.1} parent=1 // loop_header_branch
      %23 = sbr.rel (%p21) target = $region8
    $region5: #{tpu_custom_call.1} parent=1 // loop_body
      %s25 = ssub.s32 %s20, 1
      %s26 = ssub.s32 %s20, 2
      %s27 = sadd.s32 %s20, 1
      %s28 = ssub.s32 %s20, %s27
      %p29 = scmp.eq.s32.totalorder %s28, 0
      %s31 = sadd.s32 %s30, 1
      %s32 = scalar_select %p29, %s30, %s31
      %p35 = pneg %p29
      %p36 = scmp.eq.s32.totalorder %s20, 1
      %p37 = por %p35, %p36
      %p38 = scmp.ne.s32.totalorder %s30, %s33
      %p39 = scmp.eq.s32.totalorder %s20, 0
      %p40 = por %p38, %p39
      %p41 = scmp.ne.s32.totalorder %s30, %s33
      %p42 = scmp.eq.s32.totalorder %s25, 1
      %p43 = por %p41, %p42
      %p44 = scmp.ne.s32.totalorder %s33, %s34
      %p45 = scmp.eq.s32.totalorder %s25, 0
      %p46 = por %p44, %p45
      %p47 = scmp.ne.s32.totalorder %s33, %s34
      %p48 = scmp.eq.s32.totalorder %s26, 1
      %p49 = por %p47, %p48
      %p51 = scmp.ne.s32.totalorder %s34, %s50
      %p52 = scmp.eq.s32.totalorder %s26, 0
      %p53 = por %p51, %p52
      %s54 = ssub.s32 %s20, %s27
      %p55 = scmp.eq.s32.totalorder %s54, 0
      %s57 = sadd.s32 %s56, 1
      %s58 = scalar_select %p55, %s56, %s57
      %p61 = pneg %p55
      %p62 = scmp.eq.s32.totalorder %s20, 1
      %p63 = por %p61, %p62
      %p64 = scmp.ne.s32.totalorder %s56, %s59
      %p65 = scmp.eq.s32.totalorder %s20, 0
      %p66 = por %p64, %p65
      %p67 = scmp.ne.s32.totalorder %s56, %s59
      %p68 = scmp.eq.s32.totalorder %s25, 1
      %p69 = por %p67, %p68
      %p70 = scmp.ne.s32.totalorder %s59, %s60
      %p71 = scmp.eq.s32.totalorder %s25, 0
      %p72 = por %p70, %p71
      %p73 = scmp.ne.s32.totalorder %s59, %s60
      %p74 = scmp.eq.s32.totalorder %s26, 1
      %p75 = por %p73, %p74
      %p77 = scmp.ne.s32.totalorder %s60, %s76
      %p78 = scmp.eq.s32.totalorder %s26, 0
      %p79 = por %p77, %p78
      %s80 = ssub.s32 %s20, %s27
      %p81 = scmp.eq.s32.totalorder %s80, 0
      %s83 = sadd.s32 %s82, 1
      %s84 = scalar_select %p81, %s82, %s83
      %p87 = pneg %p81
      %p88 = scmp.eq.s32.totalorder %s20, 1
      %p89 = por %p87, %p88
      %p90 = scmp.ne.s32.totalorder %s82, %s85
      %p91 = scmp.eq.s32.totalorder %s20, 0
      %p92 = por %p90, %p91
      %p93 = scmp.ne.s32.totalorder %s82, %s85
      %p94 = scmp.eq.s32.totalorder %s25, 1
      %p95 = por %p93, %p94
      %p96 = scmp.ne.s32.totalorder %s85, %s86
      %p97 = scmp.eq.s32.totalorder %s25, 0
      %p98 = por %p96, %p97
      %p99 = scmp.ne.s32.totalorder %s85, %s86
      %p100 = scmp.eq.s32.totalorder %s26, 1
      %p101 = por %p99, %p100
      %p103 = scmp.ne.s32.totalorder %s86, %s102
      %p104 = scmp.eq.s32.totalorder %s26, 0
      %p105 = por %p103, %p104
      %s106 = ssub.s32 %s20, %s27
      %p107 = scmp.eq.s32.totalorder %s106, 0
      %s109 = sadd.s32 %s108, 1
      %s110 = scalar_select %p107, %s108, %s109
      %p113 = pneg %p107
      %p114 = scmp.eq.s32.totalorder %s20, 1
      %p115 = por %p113, %p114
      %p116 = scmp.ne.s32.totalorder %s108, %s111
      %p117 = scmp.eq.s32.totalorder %s20, 0
      %p118 = por %p116, %p117
      %p119 = scmp.ne.s32.totalorder %s108, %s111
      %p120 = scmp.eq.s32.totalorder %s25, 1
      %p121 = por %p119, %p120
      %p122 = scmp.ne.s32.totalorder %s111, %s112
      %p123 = scmp.eq.s32.totalorder %s25, 0
      %p124 = por %p122, %p123
      %p125 = scmp.ne.s32.totalorder %s111, %s112
      %p126 = scmp.eq.s32.totalorder %s26, 1
      %p127 = por %p125, %p126
      %p129 = scmp.ne.s32.totalorder %s112, %s128
      %p130 = scmp.eq.s32.totalorder %s26, 0
      %p131 = por %p129, %p130
      %s133 = sadd.s32 %s132, 1
      %p136 = scmp.eq.s32.totalorder %s20, 1
      %p137 = scmp.ne.s32.totalorder %s132, %s134
      %p138 = scmp.eq.s32.totalorder %s20, 0
      %p139 = por %p137, %p138
      %p140 = scmp.ne.s32.totalorder %s132, %s134
      %p141 = scmp.eq.s32.totalorder %s25, 1
      %p142 = por %p140, %p141
      %p143 = scmp.ne.s32.totalorder %s134, %s135
      %p144 = scmp.eq.s32.totalorder %s25, 0
      %p145 = por %p143, %p144
      %p146 = scmp.ne.s32.totalorder %s134, %s135
      %p147 = scmp.eq.s32.totalorder %s26, 1
      %p148 = por %p146, %p147
      %p150 = scmp.ne.s32.totalorder %s135, %s149
      %p151 = scmp.eq.s32.totalorder %s26, 0
      %p152 = por %p150, %p151
      %s153 = ssub.s32 %s20, %s27
      %p154 = scmp.eq.s32.totalorder %s153, 0
      %s156 = sadd.s32 %s155, 1
      %s157 = scalar_select %p154, %s155, %s156
      %p160 = pneg %p154
      %p161 = scmp.eq.s32.totalorder %s20, 1
      %p162 = por %p160, %p161
      %p163 = scmp.ne.s32.totalorder %s155, %s158
      %p164 = scmp.eq.s32.totalorder %s20, 0
      %p165 = por %p163, %p164
      %p166 = scmp.ne.s32.totalorder %s155, %s158
      %p167 = scmp.eq.s32.totalorder %s25, 1
      %p168 = por %p166, %p167
      %p169 = scmp.ne.s32.totalorder %s158, %s159
      %p170 = scmp.eq.s32.totalorder %s25, 0
      %p171 = por %p169, %p170
      %p172 = scmp.ne.s32.totalorder %s158, %s159
      %p173 = scmp.eq.s32.totalorder %s26, 1
      %p174 = por %p172, %p173
      %p176 = scmp.ne.s32.totalorder %s159, %s175
      %p177 = scmp.eq.s32.totalorder %s26, 0
      %p178 = por %p176, %p177
      %p179 = scmp.le.s32.totalorder 1, %s20
      %p180 = scmp.lt.s32.totalorder %s20, 3
      %p181 = pnand %p179, %p180
      %p182 = pneg %p181
      // Predicated region
      $region9: #{tpu_custom_call.1} parent=5 // pred_check
        _
      $region10: #{tpu_custom_call.1} parent=5 // pred_check_branch
        %184 = sbr.rel (%p181) target = $region12
      $region11: #{tpu_custom_call.1} parent=5 // pred_region
        %s185 = ssub.s32 %s20, 1
        // Predicated region
        $region13: #{tpu_custom_call.1} parent=11 // pred_check
          %p186 = pneg %p145
        $region14: #{tpu_custom_call.1} parent=11 // pred_check_branch
          %188 = sbr.rel (%p186) target = $region16
        $region15: #{tpu_custom_call.1} parent=11 // pred_region
          %s190 = ssub.s32 1024, 1024
          %191 = vsyncadd [#allocation6], %s190
          %s192 = sshll.u32 [#allocation7], 4
          %s193 = int_to_ptr.vmem [resolvable:$true] %s192
          %198 = dma.hbm_to_vmem [thread:$0]  %s4, 1024, %s193, [#allocation6], 128, 128, 8
        $region16: #{tpu_custom_call.1} parent=11 // pred_fallthru
          _
      $region12: #{tpu_custom_call.1} parent=5 // pred_fallthru
        _
      %p199 = scmp.lt.s32.totalorder %s20, 2
      // Predicated region
      $region17: #{tpu_custom_call.1} parent=5 // pred_check
        %p200 = pneg %p199
      $region18: #{tpu_custom_call.1} parent=5 // pred_check_branch
        %202 = sbr.rel (%p200) target = $region20
      $region19: #{tpu_custom_call.1} parent=5 // pred_region
        // Predicated region
        $region21: #{tpu_custom_call.1} parent=19 // pred_check
          %p203 = pneg %p40
        $region22: #{tpu_custom_call.1} parent=19 // pred_check_branch
          %205 = sbr.rel (%p203) target = $region24
        $region23: #{tpu_custom_call.1} parent=19 // pred_region
          %s206 = smul.u32 2, %s20
          %p207 = scmp.lt.s32.totalorder %s206, 3
          %s208 = scalar_select %p207, %s206, 3
          %s209 = smul.addr %s208, 8
          %s210 = scalar_lea.vmem %s0, %s209
          %s211 = smul.u32 2, %s20
        $region24: #{tpu_custom_call.1} parent=19 // pred_fallthru
          _
        // Predicated region
        $region25: #{tpu_custom_call.1} parent=19 // pred_check
          %p212 = pneg %p66
        $region26: #{tpu_custom_call.1} parent=19 // pred_check_branch
          %214 = sbr.rel (%p212) target = $region28
        $region27: #{tpu_custom_call.1} parent=19 // pred_region
          %s215 = sand.u32 %s56, 1
          %s216 = scalar_lea.sflag [#allocation3], %s215
          %s217 = sand.u32 %s56, 1
          %s218 = smul.addr %s217, 16
          %s219 = scalar_lea.vmem [#allocation2], %s218
          %s220 = smul.u32 2, %s20
          %s222 = ssub.s32 256, 256
          %223 = vsyncadd %s216, %s222
          %s224 = smul.addr %s220, 128
          %s225 = scalar_lea.hbm %s1, %s224
          %s226 = sshll.u32 %s219, 4
          %s227 = int_to_ptr.vmem [resolvable:$true] %s226
          %232 = dma.hbm_to_vmem [thread:$0]  %s225, 256, %s227, %s216, 128, 128, 8
        $region28: #{tpu_custom_call.1} parent=19 // pred_fallthru
          _
        // Predicated region
        $region29: #{tpu_custom_call.1} parent=19 // pred_check
          %p233 = pneg %p92
        $region30: #{tpu_custom_call.1} parent=19 // pred_check_branch
          %235 = sbr.rel (%p233) target = $region32
        $region31: #{tpu_custom_call.1} parent=19 // pred_region
          %s236 = sand.u32 %s20, 1
          %s237 = scalar_lea.sflag [#allocation6], %s236
          %s238 = sand.u32 %s82, 1
          %s239 = smul.addr %s238, 16
          %s240 = scalar_lea.vmem [#allocation5], %s239
          %s241 = smul.u32 2, %s20
          %s243 = ssub.s32 256, 256
          %244 = vsyncadd %s237, %s243
          %s245 = smul.addr %s241, 128
          %s246 = scalar_lea.hbm %s2, %s245
          %s247 = sshll.u32 %s240, 4
          %s248 = int_to_ptr.vmem [resolvable:$true] %s247
          %253 = dma.hbm_to_vmem [thread:$0]  %s246, 256, %s248, %s237, 128, 128, 8
        $region32: #{tpu_custom_call.1} parent=19 // pred_fallthru
          _
        // Predicated region
        $region33: #{tpu_custom_call.1} parent=19 // pred_check
          %p254 = pneg %p118
        $region34: #{tpu_custom_call.1} parent=19 // pred_check_branch
          %256 = sbr.rel (%p254) target = $region36
        $region35: #{tpu_custom_call.1} parent=19 // pred_region
          %s257 = smul.u32 2, %s20
          %p258 = scmp.lt.s32.totalorder %s257, 3
          %s259 = scalar_select %p258, %s257, 3
          %s260 = smul.addr %s259, 8
          %s261 = scalar_lea.vmem %s3, %s260
          %s262 = smul.u32 2, %s20
        $region36: #{tpu_custom_call.1} parent=19 // pred_fallthru
          _
      $region20: #{tpu_custom_call.1} parent=5 // pred_fallthru
        _
      %p263 = scmp.le.s32.totalorder 1, %s20
      %p264 = scmp.lt.s32.totalorder %s20, 3
      %p265 = pnand %p263, %p264
      %p266 = pneg %p265
      // Predicated region
      $region37: #{tpu_custom_call.1} parent=5 // pred_check
        _
      $region38: #{tpu_custom_call.1} parent=5 // pred_check_branch
        %268 = sbr.rel (%p265) target = $region40
      $region39: #{tpu_custom_call.1} parent=5 // pred_region
        %s269 = ssub.s32 %s20, 1
        %s270 = sand.u32 %s59, 1
        %s271 = scalar_lea.sflag [#allocation3], %s270
        %s272 = sand.u32 %s59, 1
        %s273 = smul.addr %s272, 16
        %s274 = scalar_lea.vmem [#allocation2], %s273
        // Predicated region
        $region41: #{tpu_custom_call.1} parent=39 // pred_check
          %p275 = pneg %p72
        $region42: #{tpu_custom_call.1} parent=39 // pred_check_branch
          %277 = sbr.rel (%p275) target = $region44
        $region43: #{tpu_custom_call.1} parent=39 // pred_region
          %278 = dma.done %s271, 256
        $region44: #{tpu_custom_call.1} parent=39 // pred_fallthru
          _
        %s279 = sand.u32 %s25, 1
        %s280 = scalar_lea.sflag [#allocation6], %s279
        %s281 = sand.u32 %s85, 1
        %s282 = smul.addr %s281, 16
        %s283 = scalar_lea.vmem [#allocation5], %s282
        // Predicated region
        $region45: #{tpu_custom_call.1} parent=39 // pred_check
          %p284 = pneg %p98
        $region46: #{tpu_custom_call.1} parent=39 // pred_check_branch
          %286 = sbr.rel (%p284) target = $region48
        $region47: #{tpu_custom_call.1} parent=39 // pred_region
          %287 = dma.done %s280, 256
        $region48: #{tpu_custom_call.1} parent=39 // pred_fallthru
          _
        // Predicated region
        $region49: #{tpu_custom_call.1} parent=39 // pred_check
          %p288 = pneg %p145
        $region50: #{tpu_custom_call.1} parent=39 // pred_check_branch
          %290 = sbr.rel (%p288) target = $region52
        $region51: #{tpu_custom_call.1} parent=39 // pred_region
          %291 = dma.done [#allocation6], 1024
        $region52: #{tpu_custom_call.1} parent=39 // pred_fallthru
          _
        %s292 = smul.u32 2, %s25
        %p293 = scmp.lt.s32.totalorder %s292, 3
        %s294 = scalar_select %p293, %s292, 3
        %s295 = smul.addr %s294, 8
        %s296 = scalar_lea.vmem %s0, %s295
        %p297 = pneg %p46
        %p298 = pneg %p43
        %s299 = sand.u32 %s59, 1
        %s300 = scalar_lea.sflag [#allocation3], %s299
        %s301 = sand.u32 %s59, 1
        %s302 = smul.addr %s301, 16
        %s303 = scalar_lea.vmem [#allocation2], %s302
        %p304 = pneg %p72
        %p305 = pneg %p69
        %s306 = sand.u32 %s25, 1
        %s307 = scalar_lea.sflag [#allocation6], %s306
        %s308 = sand.u32 %s85, 1
        %s309 = smul.addr %s308, 16
        %s310 = scalar_lea.vmem [#allocation5], %s309
        %p311 = pneg %p98
        %p312 = pneg %p95
        %s313 = smul.u32 2, %s25
        %p314 = scmp.lt.s32.totalorder %s313, 3
        %s315 = scalar_select %p314, %s313, 3
        %s316 = smul.addr %s315, 8
        %s317 = scalar_lea.vmem %s3, %s316
        %p318 = pneg %p124
        %p319 = pneg %p121
        %p320 = pneg %p145
        %p321 = pneg %p142
        %p322 = pneg %p171
        %p323 = pneg %p168
        %s324 = sand.u32 %s158, 1
        %s325 = scalar_lea.sflag [#allocation4], %s324
        %s326 = sand.u32 %s158, 1
        %s327 = smul.addr %s326, 16
        %s328 = scalar_lea.vmem [#allocation8], %s327
        %s329 = smul.u32 2, %s25
        %p330 = scmp.lt.s32.totalorder %s329, 3
        %s331 = scalar_select %p330, %s329, 3
        %s332 = smul.addr %s331, 8
        %s333 = scalar_lea.vmem %s0, %s332
        %s334 = smul.u32 2, %s25
        %s335 = smul.u32 2, %s25
        %s336 = smul.u32 2, %s25
        %s337 = smul.u32 2, %s25
        %p338 = scmp.lt.s32.totalorder %s337, 3
        %s339 = scalar_select %p338, %s337, 3
        %s340 = smul.addr %s339, 8
        %s341 = scalar_lea.vmem %s3, %s340
        %s342 = smul.u32 2, %s25
        %s343 = smul.u32 2, %s25
        %v344 = vld [vmem:[%s333] sm:$0xff]
        %v345 = vld [vmem:[%s333 + $0x8] sm:$0xff]
        %v346 = vld [vmem:[%s274] sm:$0xff]
        %v347 = vld [vmem:[%s274 + $0x8] sm:$0xff]
        %v348 = vld [vmem:[%s283] sm:$0xff]
        %v349 = vld [vmem:[%s283 + $0x8] sm:$0xff]
        %v350 = vld [vmem:[%s341] sm:$0xff]
        %v351 = vld [vmem:[%s341 + $0x8] sm:$0xff]
        %v352 = vld [vmem:[#allocation7] sm:$0xff]
        %v353 = vld [vmem:[#allocation7 + $0x8] sm:$0xff]
        %v354 = vld [vmem:[#allocation7 + $0x10] sm:$0xff]
        %v355 = vld [vmem:[#allocation7 + $0x18] sm:$0xff]
        %v356 = vld [vmem:[#allocation7 + $0x20] sm:$0xff]
        %v357 = vld [vmem:[#allocation7 + $0x28] sm:$0xff]
        %v358 = vld [vmem:[#allocation7 + $0x30] sm:$0xff]
        %v359 = vld [vmem:[#allocation7 + $0x38] sm:$0xff]
        %vm360 = vcmp.gt.f32.partialorder %v344, 0.0
        %vm361 = vcmp.gt.f32.partialorder %v345, 0.0
        %v362 = vadd.f32 %v344, 1.0
        %v363 = vadd.f32 %v345, 1.0
        %v364 = vmul.f32 %v344, 1.442695
        %v365 = vpow.pop %v364
        %v366 = vmul.f32 %v345, 1.442695
        %v367 = vpow.pop %v366
        %v368 = vsel %vm360, %v362, %v365
        %v369 = vsel %vm361, %v363, %v367
        %vm370 = vcmp.gt.f32.partialorder %v346, 0.0
        %vm371 = vcmp.gt.f32.partialorder %v347, 0.0
        %v372 = vadd.f32 %v346, 1.0
        %v373 = vadd.f32 %v347, 1.0
        %v374 = vmul.f32 %v346, 1.442695
        %v375 = vpow.pop %v374
        %v376 = vmul.f32 %v347, 1.442695
        %v377 = vpow.pop %v376
        %v378 = vsel %vm370, %v372, %v375
        %v379 = vsel %vm371, %v373, %v377
        %381 = vset.pattern.permute.xlu0 0
        %382 = vperm.xlu0 %381, %v350
        %v383 = vpop.permute.xlu0 %382
        %386 = vset.pattern.permute.xlu0 0
        %387 = vperm.xlu0 %386, %v351
        %v388 = vpop.permute.xlu0 %387
        %v390 = vmul.f32 %v378, %v383
        %v391 = vmul.f32 %v379, %v388
        %392 = vxpose.xlu0.b32.start [1/16] %v390, 128
        %393 = vxpose.xlu0.b32.cont [2/16] 0.0, 128
        %394 = vxpose.xlu0.b32.cont [3/16] 0.0, 128
        %395 = vxpose.xlu0.b32.cont [4/16] 0.0, 128
        %396 = vxpose.xlu0.b32.cont [5/16] 0.0, 128
        %397 = vxpose.xlu0.b32.cont [6/16] 0.0, 128
        %398 = vxpose.xlu0.b32.cont [7/16] 0.0, 128
        %399 = vxpose.xlu0.b32.cont [8/16] 0.0, 128
        %400 = vxpose.xlu0.b32.cont [9/16] 0.0, 128
        %401 = vxpose.xlu0.b32.cont [10/16] 0.0, 128
        %402 = vxpose.xlu0.b32.cont [11/16] 0.0, 128
        %403 = vxpose.xlu0.b32.cont [12/16] 0.0, 128
        %404 = vxpose.xlu0.b32.cont [13/16] 0.0, 128
        %405 = vxpose.xlu0.b32.cont [14/16] 0.0, 128
        %406 = vxpose.xlu0.b32.cont [15/16] 0.0, 128
        %407 = vxpose.xlu0.b32.end [16/16] 0.0, 128
        %v408 = vpop.trf.xlu0
        %v409 = vpop.trf.xlu0
        %v410 = vpop.trf.xlu0
        %v411 = vpop.trf.xlu0
        %v412 = vpop.trf.xlu0
        %v413 = vpop.trf.xlu0
        %v414 = vpop.trf.xlu0
        %v415 = vpop.trf.xlu0
        %v416 = vpop.trf.xlu0
        %v417 = vpop.trf.xlu0
        %v418 = vpop.trf.xlu0
        %v419 = vpop.trf.xlu0
        %v420 = vpop.trf.xlu0
        %v421 = vpop.trf.xlu0
        %v422 = vpop.trf.xlu0
        %v423 = vpop.trf.xlu0
        %vm424 = vcmask 64512
        %v426 = vsel %vm424, %v408, 0
        %v429 = vsel %vm424, %v409, 0
        %v432 = vsel %vm424, %v410, 0
        %v435 = vsel %vm424, %v411, 0
        %v438 = vsel %vm424, %v412, 0
        %v441 = vsel %vm424, %v413, 0
        %v444 = vsel %vm424, %v414, 0
        %v447 = vsel %vm424, %v415, 0
        %449 = vmatprep.subr.mxu0 0.0
        %450 = vmatpush1.msra.mxu0 %v348
        %451 = vmatprep.subr.mxu0 0.0
        %452 = vmatpush1.msra.mxu0 0.0
        %453 = vmatprep.subr.mxu0 0.0
        %454 = vmatpush1.msra.mxu0 0.0
        %455 = vmatprep.subr.mxu0 0.0
        %456 = vmatpush1.msra.mxu0 0.0
        %457 = vmatprep.subr.mxu0 0.0
        %458 = vmatpush1.msra.mxu0 0.0
        %459 = vmatprep.subr.mxu0 0.0
        %460 = vmatpush1.msra.mxu0 0.0
        %461 = vmatprep.subr.mxu0 0.0
        %462 = vmatpush1.msra.mxu0 0.0
        %463 = vmatprep.subr.mxu0 0.0
        %464 = vmatpush1.msra.mxu0 0.0
        %465 = vmatprep.subr.mxu0 0.0
        %466 = vmatpush1.msra.mxu0 0.0
        %467 = vmatprep.subr.mxu0 0.0
        %468 = vmatpush1.msra.mxu0 0.0
        %469 = vmatprep.subr.mxu0 0.0
        %470 = vmatpush1.msra.mxu0 0.0
        %471 = vmatprep.subr.mxu0 0.0
        %472 = vmatpush1.msra.mxu0 0.0
        %473 = vmatprep.subr.mxu0 0.0
        %474 = vmatpush1.msra.mxu0 0.0
        %475 = vmatprep.subr.mxu0 0.0
        %476 = vmatpush1.msra.mxu0 0.0
        %477 = vmatprep.subr.mxu0 0.0
        %478 = vmatpush1.msra.mxu0 0.0
        %479 = vmatprep.subr.mxu0 0.0
        %480 = vmatpush1.msra.mxu0 0.0
        %481 = vmatprep.subr.mxu0 0.0
        %482 = vmatpush1.msra.mxu0 0.0
        %483 = vmatprep.subr.mxu0 0.0
        %484 = vmatpush1.msra.mxu0 0.0
        %485 = vmatprep.subr.mxu0 0.0
        %486 = vmatpush1.msra.mxu0 0.0
        %487 = vmatprep.subr.mxu0 0.0
        %488 = vmatpush1.msra.mxu0 0.0
        %489 = vmatprep.subr.mxu0 0.0
        %490 = vmatpush1.msra.mxu0 0.0
        %491 = vmatprep.subr.mxu0 0.0
        %492 = vmatpush1.msra.mxu0 0.0
        %493 = vmatprep.subr.mxu0 0.0
        %494 = vmatpush1.msra.mxu0 0.0
        %495 = vmatprep.subr.mxu0 0.0
        %496 = vmatpush1.msra.mxu0 0.0
        %497 = vmatprep.subr.mxu0 0.0
        %498 = vmatpush1.msra.mxu0 0.0
        %499 = vmatprep.subr.mxu0 0.0
        %500 = vmatpush1.msra.mxu0 0.0
        %501 = vmatprep.subr.mxu0 0.0
        %502 = vmatpush1.msra.mxu0 0.0
        %503 = vmatprep.subr.mxu0 0.0
        %504 = vmatpush1.msra.mxu0 0.0
        %505 = vmatprep.subr.mxu0 0.0
        %506 = vmatpush1.msra.mxu0 0.0
        %507 = vmatprep.subr.mxu0 0.0
        %508 = vmatpush1.msra.mxu0 0.0
        %509 = vmatprep.subr.mxu0 0.0
        %510 = vmatpush1.msra.mxu0 0.0
        %511 = vmatprep.subr.mxu0 0.0
        %512 = vmatpush1.msra.mxu0 0.0
        %513 = vmatprep.mubr.f32.mxu0 0.0
        %514 = vmatmul.mubr.f32.gmra.mrb[0].mxu0 %v426
        %v515 = vpop.f32.mrb[0].mxu0
        %v516 = vadd.f32 0.0, %v515
        %v517 = vpop.f32.mrb[0].mxu0
        %518 = vmatprep.mubr.f32.mxu0 0.0
        %519 = vmatmul.mubr.f32.gmra.mrb[0].mxu0 %v429
        %v520 = vpop.f32.mrb[0].mxu0
        %v521 = vadd.f32 0.0, %v520
        %v522 = vpop.f32.mrb[0].mxu0
        %523 = vmatprep.mubr.f32.mxu0 0.0
        %524 = vmatmul.mubr.f32.gmra.mrb[0].mxu0 %v432
        %v525 = vpop.f32.mrb[0].mxu0
        %v526 = vadd.f32 0.0, %v525
        %v527 = vpop.f32.mrb[0].mxu0
        %528 = vmatprep.mubr.f32.mxu0 0.0
        %529 = vmatmul.mubr.f32.gmra.mrb[0].mxu0 %v435
        %v530 = vpop.f32.mrb[0].mxu0
        %v531 = vadd.f32 0.0, %v530
        %v532 = vpop.f32.mrb[0].mxu0
        %533 = vmatprep.mubr.f32.mxu0 0.0
        %534 = vmatmul.mubr.f32.gmra.mrb[0].mxu0 %v438
        %v535 = vpop.f32.mrb[0].mxu0
        %v536 = vadd.f32 0.0, %v535
        %v537 = vpop.f32.mrb[0].mxu0
        %538 = vmatprep.mubr.f32.mxu0 0.0
        %539 = vmatmul.mubr.f32.gmra.mrb[0].mxu0 %v441
        %v540 = vpop.f32.mrb[0].mxu0
        %v541 = vadd.f32 0.0, %v540
        %v542 = vpop.f32.mrb[0].mxu0
        %543 = vmatprep.mubr.f32.mxu0 0.0
        %544 = vmatmul.mubr.f32.gmra.mrb[0].mxu0 %v444
        %v545 = vpop.f32.mrb[0].mxu0
        %v546 = vadd.f32 0.0, %v545
        %v547 = vpop.f32.mrb[0].mxu0
        %548 = vmatprep.mubr.f32.mxu0 0.0
        %549 = vmatmul.mubr.f32.gmra.mrb[0].mxu0 %v447
        %v550 = vpop.f32.mrb[0].mxu0
        %v551 = vadd.f32 0.0, %v550
        %v552 = vpop.f32.mrb[0].mxu0
        %553 = vdwg.mxu0
        %554 = vxpose.xlu0.b32.start [1/16] %v391, 128
        %555 = vxpose.xlu0.b32.cont [2/16] 0.0, 128
        %556 = vxpose.xlu0.b32.cont [3/16] 0.0, 128
        %557 = vxpose.xlu0.b32.cont [4/16] 0.0, 128
        %558 = vxpose.xlu0.b32.cont [5/16] 0.0, 128
        %559 = vxpose.xlu0.b32.cont [6/16] 0.0, 128
        %560 = vxpose.xlu0.b32.cont [7/16] 0.0, 128
        %561 = vxpose.xlu0.b32.cont [8/16] 0.0, 128
        %562 = vxpose.xlu0.b32.cont [9/16] 0.0, 128
        %563 = vxpose.xlu0.b32.cont [10/16] 0.0, 128
        %564 = vxpose.xlu0.b32.cont [11/16] 0.0, 128
        %565 = vxpose.xlu0.b32.cont [12/16] 0.0, 128
        %566 = vxpose.xlu0.b32.cont [13/16] 0.0, 128
        %567 = vxpose.xlu0.b32.cont [14/16] 0.0, 128
        %568 = vxpose.xlu0.b32.cont [15/16] 0.0, 128
        %569 = vxpose.xlu0.b32.end [16/16] 0.0, 128
        %v570 = vpop.trf.xlu0
        %v571 = vpop.trf.xlu0
        %v572 = vpop.trf.xlu0
        %v573 = vpop.trf.xlu0
        %v574 = vpop.trf.xlu0
        %v575 = vpop.trf.xlu0
        %v576 = vpop.trf.xlu0
        %v577 = vpop.trf.xlu0
        %v578 = vpop.trf.xlu0
        %v579 = vpop.trf.xlu0
        %v580 = vpop.trf.xlu0
        %v581 = vpop.trf.xlu0
        %v582 = vpop.trf.xlu0
        %v583 = vpop.trf.xlu0
        %v584 = vpop.trf.xlu0
        %v585 = vpop.trf.xlu0
        %v587 = vsel %vm424, %v570, 0
        %v590 = vsel %vm424, %v571, 0
        %v593 = vsel %vm424, %v572, 0
        %v596 = vsel %vm424, %v573, 0
        %v599 = vsel %vm424, %v574, 0
        %v602 = vsel %vm424, %v575, 0
        %v605 = vsel %vm424, %v576, 0
        %v608 = vsel %vm424, %v577, 0
        %610 = vmatprep.subr.mxu0 0.0
        %611 = vmatpush1.msra.mxu0 %v349
        %612 = vmatprep.subr.mxu0 0.0
        %613 = vmatpush1.msra.mxu0 0.0
        %614 = vmatprep.subr.mxu0 0.0
        %615 = vmatpush1.msra.mxu0 0.0
        %616 = vmatprep.subr.mxu0 0.0
        %617 = vmatpush1.msra.mxu0 0.0
        %618 = vmatprep.subr.mxu0 0.0
        %619 = vmatpush1.msra.mxu0 0.0
        %620 = vmatprep.subr.mxu0 0.0
        %621 = vmatpush1.msra.mxu0 0.0
        %622 = vmatprep.subr.mxu0 0.0
        %623 = vmatpush1.msra.mxu0 0.0
        %624 = vmatprep.subr.mxu0 0.0
        %625 = vmatpush1.msra.mxu0 0.0
        %626 = vmatprep.subr.mxu0 0.0
        %627 = vmatpush1.msra.mxu0 0.0
        %628 = vmatprep.subr.mxu0 0.0
        %629 = vmatpush1.msra.mxu0 0.0
        %630 = vmatprep.subr.mxu0 0.0
        %631 = vmatpush1.msra.mxu0 0.0
        %632 = vmatprep.subr.mxu0 0.0
        %633 = vmatpush1.msra.mxu0 0.0
        %634 = vmatprep.subr.mxu0 0.0
        %635 = vmatpush1.msra.mxu0 0.0
        %636 = vmatprep.subr.mxu0 0.0
        %637 = vmatpush1.msra.mxu0 0.0
        %638 = vmatprep.subr.mxu0 0.0
        %639 = vmatpush1.msra.mxu0 0.0
        %640 = vmatprep.subr.mxu0 0.0
        %641 = vmatpush1.msra.mxu0 0.0
        %642 = vmatprep.subr.mxu0 0.0
        %643 = vmatpush1.msra.mxu0 0.0
        %644 = vmatprep.subr.mxu0 0.0
        %645 = vmatpush1.msra.mxu0 0.0
        %646 = vmatprep.subr.mxu0 0.0
        %647 = vmatpush1.msra.mxu0 0.0
        %648 = vmatprep.subr.mxu0 0.0
        %649 = vmatpush1.msra.mxu0 0.0
        %650 = vmatprep.subr.mxu0 0.0
        %651 = vmatpush1.msra.mxu0 0.0
        %652 = vmatprep.subr.mxu0 0.0
        %653 = vmatpush1.msra.mxu0 0.0
        %654 = vmatprep.subr.mxu0 0.0
        %655 = vmatpush1.msra.mxu0 0.0
        %656 = vmatprep.subr.mxu0 0.0
        %657 = vmatpush1.msra.mxu0 0.0
        %658 = vmatprep.subr.mxu0 0.0
        %659 = vmatpush1.msra.mxu0 0.0
        %660 = vmatprep.subr.mxu0 0.0
        %661 = vmatpush1.msra.mxu0 0.0
        %662 = vmatprep.subr.mxu0 0.0
        %663 = vmatpush1.msra.mxu0 0.0
        %664 = vmatprep.subr.mxu0 0.0
        %665 = vmatpush1.msra.mxu0 0.0
        %666 = vmatprep.subr.mxu0 0.0
        %667 = vmatpush1.msra.mxu0 0.0
        %668 = vmatprep.subr.mxu0 0.0
        %669 = vmatpush1.msra.mxu0 0.0
        %670 = vmatprep.subr.mxu0 0.0
        %671 = vmatpush1.msra.mxu0 0.0
        %672 = vmatprep.subr.mxu0 0.0
        %673 = vmatpush1.msra.mxu0 0.0
        %674 = vmatprep.mubr.f32.mxu0 0.0
        %675 = vmatmul.mubr.f32.gmra.mrb[0].mxu0 %v587
        %v676 = vpop.f32.mrb[0].mxu0
        %v677 = vadd.f32 0.0, %v676
        %v678 = vpop.f32.mrb[0].mxu0
        %679 = vmatprep.mubr.f32.mxu0 0.0
        %680 = vmatmul.mubr.f32.gmra.mrb[0].mxu0 %v590
        %v681 = vpop.f32.mrb[0].mxu0
        %v682 = vadd.f32 0.0, %v681
        %v683 = vpop.f32.mrb[0].mxu0
        %684 = vmatprep.mubr.f32.mxu0 0.0
        %685 = vmatmul.mubr.f32.gmra.mrb[0].mxu0 %v593
        %v686 = vpop.f32.mrb[0].mxu0
        %v687 = vadd.f32 0.0, %v686
        %v688 = vpop.f32.mrb[0].mxu0
        %689 = vmatprep.mubr.f32.mxu0 0.0
        %690 = vmatmul.mubr.f32.gmra.mrb[0].mxu0 %v596
        %v691 = vpop.f32.mrb[0].mxu0
        %v692 = vadd.f32 0.0, %v691
        %v693 = vpop.f32.mrb[0].mxu0
        %694 = vmatprep.mubr.f32.mxu0 0.0
        %695 = vmatmul.mubr.f32.gmra.mrb[0].mxu0 %v599
        %v696 = vpop.f32.mrb[0].mxu0
        %v697 = vadd.f32 0.0, %v696
        %v698 = vpop.f32.mrb[0].mxu0
        %699 = vmatprep.mubr.f32.mxu0 0.0
        %700 = vmatmul.mubr.f32.gmra.mrb[0].mxu0 %v602
        %v701 = vpop.f32.mrb[0].mxu0
        %v702 = vadd.f32 0.0, %v701
        %v703 = vpop.f32.mrb[0].mxu0
        %704 = vmatprep.mubr.f32.mxu0 0.0
        %705 = vmatmul.mubr.f32.gmra.mrb[0].mxu0 %v605
        %v706 = vpop.f32.mrb[0].mxu0
        %v707 = vadd.f32 0.0, %v706
        %v708 = vpop.f32.mrb[0].mxu0
        %709 = vmatprep.mubr.f32.mxu0 0.0
        %710 = vmatmul.mubr.f32.gmra.mrb[0].mxu0 %v608
        %v711 = vpop.f32.mrb[0].mxu0
        %v712 = vadd.f32 0.0, %v711
        %v713 = vpop.f32.mrb[0].mxu0
        %714 = vdwg.mxu0
        %v715 = vmul.f32 %v516, %v352
        %v716 = vmul.f32 %v521, %v353
        %v717 = vmul.f32 %v526, %v354
        %v718 = vmul.f32 %v531, %v355
        %v719 = vmul.f32 %v536, %v356
        %v720 = vmul.f32 %v541, %v357
        %v721 = vmul.f32 %v546, %v358
        %v722 = vmul.f32 %v551, %v359
        %v723 = vmul.f32 %v677, %v352
        %v724 = vmul.f32 %v682, %v353
        %v725 = vmul.f32 %v687, %v354
        %v726 = vmul.f32 %v692, %v355
        %v727 = vmul.f32 %v697, %v356
        %v728 = vmul.f32 %v702, %v357
        %v729 = vmul.f32 %v707, %v358
        %v730 = vmul.f32 %v712, %v359
        %vm731 = vcmask 523264
        %v732 = vsel %vm731, %v390, 0.0
        %v733 = vrot.slane %v732, 4
        %v734 = vadd.f32 %v732, %v733
        %v735 = vrot.slane %v734, 2
        %v736 = vadd.f32 %v734, %v735
        %v737 = vrot.slane %v736, 1
        %v738 = vadd.f32 %v736, %v737
        %v739 = vsel %vm731, %v391, 0.0
        %v740 = vrot.slane %v739, 4
        %v741 = vadd.f32 %v739, %v740
        %v742 = vrot.slane %v741, 2
        %v743 = vadd.f32 %v741, %v742
        %v744 = vrot.slane %v743, 1
        %v745 = vadd.f32 %v743, %v744
        %747 = vbcast.lane.b32.xlu0 %v738, 256
        %v748 = vpop.permute.xlu0 %747
        %s750 = sor.u32 256, 8
        %751 = vbcast.lane.b32.xlu0 %v738, %s750
        %v752 = vpop.permute.xlu0 %751
        %s754 = sor.u32 256, 16
        %755 = vbcast.lane.b32.xlu0 %v738, %s754
        %v756 = vpop.permute.xlu0 %755
        %s758 = sor.u32 256, 24
        %759 = vbcast.lane.b32.xlu0 %v738, %s758
        %v760 = vpop.permute.xlu0 %759
        %s762 = sor.u32 256, 32
        %763 = vbcast.lane.b32.xlu0 %v738, %s762
        %v764 = vpop.permute.xlu0 %763
        %s766 = sor.u32 256, 40
        %767 = vbcast.lane.b32.xlu0 %v738, %s766
        %v768 = vpop.permute.xlu0 %767
        %s770 = sor.u32 256, 48
        %771 = vbcast.lane.b32.xlu0 %v738, %s770
        %v772 = vpop.permute.xlu0 %771
        %s774 = sor.u32 256, 56
        %775 = vbcast.lane.b32.xlu0 %v738, %s774
        %v776 = vpop.permute.xlu0 %775
        %778 = vbcast.lane.b32.xlu0 %v745, 256
        %v779 = vpop.permute.xlu0 %778
        %s781 = sor.u32 256, 8
        %782 = vbcast.lane.b32.xlu0 %v745, %s781
        %v783 = vpop.permute.xlu0 %782
        %s785 = sor.u32 256, 16
        %786 = vbcast.lane.b32.xlu0 %v745, %s785
        %v787 = vpop.permute.xlu0 %786
        %s789 = sor.u32 256, 24
        %790 = vbcast.lane.b32.xlu0 %v745, %s789
        %v791 = vpop.permute.xlu0 %790
        %s793 = sor.u32 256, 32
        %794 = vbcast.lane.b32.xlu0 %v745, %s793
        %v795 = vpop.permute.xlu0 %794
        %s797 = sor.u32 256, 40
        %798 = vbcast.lane.b32.xlu0 %v745, %s797
        %v799 = vpop.permute.xlu0 %798
        %s801 = sor.u32 256, 48
        %802 = vbcast.lane.b32.xlu0 %v745, %s801
        %v803 = vpop.permute.xlu0 %802
        %s805 = sor.u32 256, 56
        %806 = vbcast.lane.b32.xlu0 %v745, %s805
        %v807 = vpop.permute.xlu0 %806
        %v808 = vmul.f32 %v748, %v352
        %v809 = vmul.f32 %v752, %v353
        %v810 = vmul.f32 %v756, %v354
        %v811 = vmul.f32 %v760, %v355
        %v812 = vmul.f32 %v764, %v356
        %v813 = vmul.f32 %v768, %v357
        %v814 = vmul.f32 %v772, %v358
        %v815 = vmul.f32 %v776, %v359
        %v816 = vmul.f32 %v779, %v352
        %v817 = vmul.f32 %v783, %v353
        %v818 = vmul.f32 %v787, %v354
        %v819 = vmul.f32 %v791, %v355
        %v820 = vmul.f32 %v795, %v356
        %v821 = vmul.f32 %v799, %v357
        %v822 = vmul.f32 %v803, %v358
        %v823 = vmul.f32 %v807, %v359
        %v825 = vsel %vm731, %v368, 0
        %827 = vmatprep.subr.mxu0 0.0
        %828 = vmatpush1.msra.mxu0 %v715
        %829 = vmatprep.subr.mxu0 0.0
        %830 = vmatpush1.msra.mxu0 %v716
        %831 = vmatprep.subr.mxu0 0.0
        %832 = vmatpush1.msra.mxu0 %v717
        %833 = vmatprep.subr.mxu0 0.0
        %834 = vmatpush1.msra.mxu0 %v718
        %835 = vmatprep.subr.mxu0 0.0
        %836 = vmatpush1.msra.mxu0 %v719
        %837 = vmatprep.subr.mxu0 0.0
        %838 = vmatpush1.msra.mxu0 %v720
        %839 = vmatprep.subr.mxu0 0.0
        %840 = vmatpush1.msra.mxu0 %v721
        %841 = vmatprep.subr.mxu0 0.0
        %842 = vmatpush1.msra.mxu0 %v722
        %843 = vmatprep.subr.mxu0 0.0
        %844 = vmatpush1.msra.mxu0 0.0
        %845 = vmatprep.subr.mxu0 0.0
        %846 = vmatpush1.msra.mxu0 0.0
        %847 = vmatprep.subr.mxu0 0.0
        %848 = vmatpush1.msra.mxu0 0.0
        %849 = vmatprep.subr.mxu0 0.0
        %850 = vmatpush1.msra.mxu0 0.0
        %851 = vmatprep.subr.mxu0 0.0
        %852 = vmatpush1.msra.mxu0 0.0
        %853 = vmatprep.subr.mxu0 0.0
        %854 = vmatpush1.msra.mxu0 0.0
        %855 = vmatprep.subr.mxu0 0.0
        %856 = vmatpush1.msra.mxu0 0.0
        %857 = vmatprep.subr.mxu0 0.0
        %858 = vmatpush1.msra.mxu0 0.0
        %859 = vmatprep.subr.mxu0 0.0
        %860 = vmatpush1.msra.mxu0 0.0
        %861 = vmatprep.subr.mxu0 0.0
        %862 = vmatpush1.msra.mxu0 0.0
        %863 = vmatprep.subr.mxu0 0.0
        %864 = vmatpush1.msra.mxu0 0.0
        %865 = vmatprep.subr.mxu0 0.0
        %866 = vmatpush1.msra.mxu0 0.0
        %867 = vmatprep.subr.mxu0 0.0
        %868 = vmatpush1.msra.mxu0 0.0
        %869 = vmatprep.subr.mxu0 0.0
        %870 = vmatpush1.msra.mxu0 0.0
        %871 = vmatprep.subr.mxu0 0.0
        %872 = vmatpush1.msra.mxu0 0.0
        %873 = vmatprep.subr.mxu0 0.0
        %874 = vmatpush1.msra.mxu0 0.0
        %875 = vmatprep.subr.mxu0 0.0
        %876 = vmatpush1.msra.mxu0 0.0
        %877 = vmatprep.subr.mxu0 0.0
        %878 = vmatpush1.msra.mxu0 0.0
        %879 = vmatprep.subr.mxu0 0.0
        %880 = vmatpush1.msra.mxu0 0.0
        %881 = vmatprep.subr.mxu0 0.0
        %882 = vmatpush1.msra.mxu0 0.0
        %883 = vmatprep.subr.mxu0 0.0
        %884 = vmatpush1.msra.mxu0 0.0
        %885 = vmatprep.subr.mxu0 0.0
        %886 = vmatpush1.msra.mxu0 0.0
        %887 = vmatprep.subr.mxu0 0.0
        %888 = vmatpush1.msra.mxu0 0.0
        %889 = vmatprep.subr.mxu0 0.0
        %890 = vmatpush1.msra.mxu0 0.0
        %891 = vmatprep.mubr.f32.mxu0 0.0
        %892 = vmatmul.mubr.f32.gmra.mrb[0].mxu0 %v825
        %v893 = vpop.f32.mrb[0].mxu0
        %v894 = vadd.f32 0.0, %v893
        %v895 = vpop.f32.mrb[0].mxu0
        %896 = vdwg.mxu0
        %v898 = vsel %vm731, %v369, 0
        %900 = vmatprep.subr.mxu0 0.0
        %901 = vmatpush1.msra.mxu0 %v723
        %902 = vmatprep.subr.mxu0 0.0
        %903 = vmatpush1.msra.mxu0 %v724
        %904 = vmatprep.subr.mxu0 0.0
        %905 = vmatpush1.msra.mxu0 %v725
        %906 = vmatprep.subr.mxu0 0.0
        %907 = vmatpush1.msra.mxu0 %v726
        %908 = vmatprep.subr.mxu0 0.0
        %909 = vmatpush1.msra.mxu0 %v727
        %910 = vmatprep.subr.mxu0 0.0
        %911 = vmatpush1.msra.mxu0 %v728
        %912 = vmatprep.subr.mxu0 0.0
        %913 = vmatpush1.msra.mxu0 %v729
        %914 = vmatprep.subr.mxu0 0.0
        %915 = vmatpush1.msra.mxu0 %v730
        %916 = vmatprep.subr.mxu0 0.0
        %917 = vmatpush1.msra.mxu0 0.0
        %918 = vmatprep.subr.mxu0 0.0
        %919 = vmatpush1.msra.mxu0 0.0
        %920 = vmatprep.subr.mxu0 0.0
        %921 = vmatpush1.msra.mxu0 0.0
        %922 = vmatprep.subr.mxu0 0.0
        %923 = vmatpush1.msra.mxu0 0.0
        %924 = vmatprep.subr.mxu0 0.0
        %925 = vmatpush1.msra.mxu0 0.0
        %926 = vmatprep.subr.mxu0 0.0
        %927 = vmatpush1.msra.mxu0 0.0
        %928 = vmatprep.subr.mxu0 0.0
        %929 = vmatpush1.msra.mxu0 0.0
        %930 = vmatprep.subr.mxu0 0.0
        %931 = vmatpush1.msra.mxu0 0.0
        %932 = vmatprep.subr.mxu0 0.0
        %933 = vmatpush1.msra.mxu0 0.0
        %934 = vmatprep.subr.mxu0 0.0
        %935 = vmatpush1.msra.mxu0 0.0
        %936 = vmatprep.subr.mxu0 0.0
        %937 = vmatpush1.msra.mxu0 0.0
        %938 = vmatprep.subr.mxu0 0.0
        %939 = vmatpush1.msra.mxu0 0.0
        %940 = vmatprep.subr.mxu0 0.0
        %941 = vmatpush1.msra.mxu0 0.0
        %942 = vmatprep.subr.mxu0 0.0
        %943 = vmatpush1.msra.mxu0 0.0
        %944 = vmatprep.subr.mxu0 0.0
        %945 = vmatpush1.msra.mxu0 0.0
        %946 = vmatprep.subr.mxu0 0.0
        %947 = vmatpush1.msra.mxu0 0.0
        %948 = vmatprep.subr.mxu0 0.0
        %949 = vmatpush1.msra.mxu0 0.0
        %950 = vmatprep.subr.mxu0 0.0
        %951 = vmatpush1.msra.mxu0 0.0
        %952 = vmatprep.subr.mxu0 0.0
        %953 = vmatpush1.msra.mxu0 0.0
        %954 = vmatprep.subr.mxu0 0.0
        %955 = vmatpush1.msra.mxu0 0.0
        %956 = vmatprep.subr.mxu0 0.0
        %957 = vmatpush1.msra.mxu0 0.0
        %958 = vmatprep.subr.mxu0 0.0
        %959 = vmatpush1.msra.mxu0 0.0
        %960 = vmatprep.subr.mxu0 0.0
        %961 = vmatpush1.msra.mxu0 0.0
        %962 = vmatprep.subr.mxu0 0.0
        %963 = vmatpush1.msra.mxu0 0.0
        %964 = vmatprep.mubr.f32.mxu0 0.0
        %965 = vmatmul.mubr.f32.gmra.mrb[0].mxu0 %v898
        %v966 = vpop.f32.mrb[0].mxu0
        %v967 = vadd.f32 0.0, %v966
        %v968 = vpop.f32.mrb[0].mxu0
        %969 = vdwg.mxu0
        %970 = vmatprep.subr.mxu0 0.0
        %971 = vmatpush1.msra.mxu0 %v808
        %972 = vmatprep.subr.mxu0 0.0
        %973 = vmatpush1.msra.mxu0 %v809
        %974 = vmatprep.subr.mxu0 0.0
        %975 = vmatpush1.msra.mxu0 %v810
        %976 = vmatprep.subr.mxu0 0.0
        %977 = vmatpush1.msra.mxu0 %v811
        %978 = vmatprep.subr.mxu0 0.0
        %979 = vmatpush1.msra.mxu0 %v812
        %980 = vmatprep.subr.mxu0 0.0
        %981 = vmatpush1.msra.mxu0 %v813
        %982 = vmatprep.subr.mxu0 0.0
        %983 = vmatpush1.msra.mxu0 %v814
        %984 = vmatprep.subr.mxu0 0.0
        %985 = vmatpush1.msra.mxu0 %v815
        %986 = vmatprep.subr.mxu0 0.0
        %987 = vmatpush1.msra.mxu0 0.0
        %988 = vmatprep.subr.mxu0 0.0
        %989 = vmatpush1.msra.mxu0 0.0
        %990 = vmatprep.subr.mxu0 0.0
        %991 = vmatpush1.msra.mxu0 0.0
        %992 = vmatprep.subr.mxu0 0.0
        %993 = vmatpush1.msra.mxu0 0.0
        %994 = vmatprep.subr.mxu0 0.0
        %995 = vmatpush1.msra.mxu0 0.0
        %996 = vmatprep.subr.mxu0 0.0
        %997 = vmatpush1.msra.mxu0 0.0
        %998 = vmatprep.subr.mxu0 0.0
        %999 = vmatpush1.msra.mxu0 0.0
        %1000 = vmatprep.subr.mxu0 0.0
        %1001 = vmatpush1.msra.mxu0 0.0
        %1002 = vmatprep.subr.mxu0 0.0
        %1003 = vmatpush1.msra.mxu0 0.0
        %1004 = vmatprep.subr.mxu0 0.0
        %1005 = vmatpush1.msra.mxu0 0.0
        %1006 = vmatprep.subr.mxu0 0.0
        %1007 = vmatpush1.msra.mxu0 0.0
        %1008 = vmatprep.subr.mxu0 0.0
        %1009 = vmatpush1.msra.mxu0 0.0
        %1010 = vmatprep.subr.mxu0 0.0
        %1011 = vmatpush1.msra.mxu0 0.0
        %1012 = vmatprep.subr.mxu0 0.0
        %1013 = vmatpush1.msra.mxu0 0.0
        %1014 = vmatprep.subr.mxu0 0.0
        %1015 = vmatpush1.msra.mxu0 0.0
        %1016 = vmatprep.subr.mxu0 0.0
        %1017 = vmatpush1.msra.mxu0 0.0
        %1018 = vmatprep.subr.mxu0 0.0
        %1019 = vmatpush1.msra.mxu0 0.0
        %1020 = vmatprep.subr.mxu0 0.0
        %1021 = vmatpush1.msra.mxu0 0.0
        %1022 = vmatprep.subr.mxu0 0.0
        %1023 = vmatpush1.msra.mxu0 0.0
        %1024 = vmatprep.subr.mxu0 0.0
        %1025 = vmatpush1.msra.mxu0 0.0
        %1026 = vmatprep.subr.mxu0 0.0
        %1027 = vmatpush1.msra.mxu0 0.0
        %1028 = vmatprep.subr.mxu0 0.0
        %1029 = vmatpush1.msra.mxu0 0.0
        %1030 = vmatprep.subr.mxu0 0.0
        %1031 = vmatpush1.msra.mxu0 0.0
        %1032 = vmatprep.subr.mxu0 0.0
        %1033 = vmatpush1.msra.mxu0 0.0
        %1034 = vmatprep.mubr.f32.mxu0 0.0
        %1035 = vmatmul.mubr.f32.gmra.mrb[0].mxu0 %v825
        %v1036 = vpop.f32.mrb[0].mxu0
        %v1037 = vadd.f32 1e-06, %v1036
        %v1038 = vpop.f32.mrb[0].mxu0
        %1039 = vdwg.mxu0
        %1040 = vmatprep.subr.mxu0 0.0
        %1041 = vmatpush1.msra.mxu0 %v816
        %1042 = vmatprep.subr.mxu0 0.0
        %1043 = vmatpush1.msra.mxu0 %v817
        %1044 = vmatprep.subr.mxu0 0.0
        %1045 = vmatpush1.msra.mxu0 %v818
        %1046 = vmatprep.subr.mxu0 0.0
        %1047 = vmatpush1.msra.mxu0 %v819
        %1048 = vmatprep.subr.mxu0 0.0
        %1049 = vmatpush1.msra.mxu0 %v820
        %1050 = vmatprep.subr.mxu0 0.0
        %1051 = vmatpush1.msra.mxu0 %v821
        %1052 = vmatprep.subr.mxu0 0.0
        %1053 = vmatpush1.msra.mxu0 %v822
        %1054 = vmatprep.subr.mxu0 0.0
        %1055 = vmatpush1.msra.mxu0 %v823
        %1056 = vmatprep.subr.mxu0 0.0
        %1057 = vmatpush1.msra.mxu0 0.0
        %1058 = vmatprep.subr.mxu0 0.0
        %1059 = vmatpush1.msra.mxu0 0.0
        %1060 = vmatprep.subr.mxu0 0.0
        %1061 = vmatpush1.msra.mxu0 0.0
        %1062 = vmatprep.subr.mxu0 0.0
        %1063 = vmatpush1.msra.mxu0 0.0
        %1064 = vmatprep.subr.mxu0 0.0
        %1065 = vmatpush1.msra.mxu0 0.0
        %1066 = vmatprep.subr.mxu0 0.0
        %1067 = vmatpush1.msra.mxu0 0.0
        %1068 = vmatprep.subr.mxu0 0.0
        %1069 = vmatpush1.msra.mxu0 0.0
        %1070 = vmatprep.subr.mxu0 0.0
        %1071 = vmatpush1.msra.mxu0 0.0
        %1072 = vmatprep.subr.mxu0 0.0
        %1073 = vmatpush1.msra.mxu0 0.0
        %1074 = vmatprep.subr.mxu0 0.0
        %1075 = vmatpush1.msra.mxu0 0.0
        %1076 = vmatprep.subr.mxu0 0.0
        %1077 = vmatpush1.msra.mxu0 0.0
        %1078 = vmatprep.subr.mxu0 0.0
        %1079 = vmatpush1.msra.mxu0 0.0
        %1080 = vmatprep.subr.mxu0 0.0
        %1081 = vmatpush1.msra.mxu0 0.0
        %1082 = vmatprep.subr.mxu0 0.0
        %1083 = vmatpush1.msra.mxu0 0.0
        %1084 = vmatprep.subr.mxu0 0.0
        %1085 = vmatpush1.msra.mxu0 0.0
        %1086 = vmatprep.subr.mxu0 0.0
        %1087 = vmatpush1.msra.mxu0 0.0
        %1088 = vmatprep.subr.mxu0 0.0
        %1089 = vmatpush1.msra.mxu0 0.0
        %1090 = vmatprep.subr.mxu0 0.0
        %1091 = vmatpush1.msra.mxu0 0.0
        %1092 = vmatprep.subr.mxu0 0.0
        %1093 = vmatpush1.msra.mxu0 0.0
        %1094 = vmatprep.subr.mxu0 0.0
        %1095 = vmatpush1.msra.mxu0 0.0
        %1096 = vmatprep.subr.mxu0 0.0
        %1097 = vmatpush1.msra.mxu0 0.0
        %1098 = vmatprep.subr.mxu0 0.0
        %1099 = vmatpush1.msra.mxu0 0.0
        %1100 = vmatprep.subr.mxu0 0.0
        %1101 = vmatpush1.msra.mxu0 0.0
        %1102 = vmatprep.subr.mxu0 0.0
        %1103 = vmatpush1.msra.mxu0 0.0
        %1104 = vmatprep.mubr.f32.mxu0 0.0
        %1105 = vmatmul.mubr.f32.gmra.mrb[0].mxu0 %v898
        %v1106 = vpop.f32.mrb[0].mxu0
        %v1107 = vadd.f32 1e-06, %v1106
        %v1108 = vpop.f32.mrb[0].mxu0
        %1109 = vdwg.mxu0
        %v1110 = vrcp.pop %v1037
        %v1111 = vmul.f32 1.0, %v1110
        %v1112 = vrcp.pop %v1107
        %v1113 = vmul.f32 1.0, %v1112
        %v1114 = vmul.f32 %v894, %v1111
        %v1115 = vmul.f32 %v967, %v1113
        %1116 = vst.msk [vmem:[%s328] sm:$0xff] %vm731, %v1114
        %1117 = vst.msk [vmem:[%s328 + $0x8] sm:$0xff] %vm731, %v1115
        %s1118 = sand.u32 %s158, 1
        %s1119 = scalar_lea.sflag [#allocation4], %s1118
        %s1120 = sand.u32 %s158, 1
        %s1121 = smul.addr %s1120, 16
        %s1122 = scalar_lea.vmem [#allocation8], %s1121
        // Predicated region
        $region53: #{tpu_custom_call.1} parent=39 // pred_check
          %p1123 = pneg %p168
        $region54: #{tpu_custom_call.1} parent=39 // pred_check_branch
          %1125 = sbr.rel (%p1123) target = $region56
        $region55: #{tpu_custom_call.1} parent=39 // pred_region
          %s1126 = smul.u32 2, %s25
          %s1128 = ssub.s32 256, 256
          %1129 = vsyncadd %s1119, %s1128
          %s1130 = smul.addr %s1126, 128
          %s1131 = scalar_lea.hbm %s5, %s1130
          %s1132 = sshll.u32 %s1122, 4
          %s1133 = int_to_ptr.vmem [resolvable:$true] %s1132
          %1138 = dma.vmem_to_hbm [thread:$0]  %s1133, 256, %s1131, %s1119, 128, 128, 8
        $region56: #{tpu_custom_call.1} parent=39 // pred_fallthru
          _
      $region40: #{tpu_custom_call.1} parent=5 // pred_fallthru
        _
      %p1139 = scmp.le.s32.totalorder 2, %s20
      // Predicated region
      $region57: #{tpu_custom_call.1} parent=5 // pred_check
        %p1140 = pneg %p1139
      $region58: #{tpu_custom_call.1} parent=5 // pred_check_branch
        %1142 = sbr.rel (%p1140) target = $region60
      $region59: #{tpu_custom_call.1} parent=5 // pred_region
        %s1143 = ssub.s32 %s20, 2
        // Predicated region
        $region61: #{tpu_custom_call.1} parent=59 // pred_check
          %p1144 = pneg %p174
        $region62: #{tpu_custom_call.1} parent=59 // pred_check_branch
          %1146 = sbr.rel (%p1144) target = $region64
        $region63: #{tpu_custom_call.1} parent=59 // pred_region
          %s1147 = sand.u32 %s159, 1
          %s1148 = scalar_lea.sflag [#allocation4], %s1147
          %s1149 = sand.u32 %s159, 1
          %s1150 = smul.addr %s1149, 16
          %s1151 = scalar_lea.vmem [#allocation8], %s1150
          %1152 = dma.done %s1148, 256
        $region64: #{tpu_custom_call.1} parent=59 // pred_fallthru
          _
      $region60: #{tpu_custom_call.1} parent=5 // pred_fallthru
        _
    $region6: #{tpu_custom_call.1} parent=1 // loop_footer
      %s24 = sadd.s32 1, %s20
    $region7: #{tpu_custom_call.1} parent=1 // loop_footer_branch
      %19 = sbr.rel target = $region3
    $region8: #{tpu_custom_call.1} parent=1 // loop_exit
      _
    %1153 = vsyncpa [#allocation3], 1
    %s1154 = scalar_lea.sflag [#allocation3], 1
    %1155 = vsyncpa %s1154, 1
    %1156 = vsyncpa [#allocation6], 1
    %s1157 = scalar_lea.sflag [#allocation6], 1
    %1158 = vsyncpa %s1157, 1
    %1159 = vsyncpa [#allocation4], 1
    %s1160 = scalar_lea.sflag [#allocation4], 1
    %1161 = vsyncpa %s1160, 1

</llo_original>
